<compile_context>
chip_gen: v5e
topology: v5e:2x2
jax: 0.10.0
libtpu: 0.0.40
codegen_flags: <defaults>
</compile_context>

<pallas_src>
import jax
import jax.numpy as jnp
from jax.experimental import pallas as pl
from jax.experimental.pallas import tpu as pltpu


def mlp_kernel(x_ref, w1_ref, scal_ref, o_ref):
    # x_ref:    (tm, K)  VMEM   packed inputs (K = P*D, lane-dense when D | 128)
    # w1_ref:   (K, P)   VMEM   block-diagonal replicated fc1 weight
    # scal_ref: (5,)     SMEM   [b1, w2, b2, w3, b3]
    # o_ref:    (tm, P)  VMEM   packed outputs (P samples per row)
    x = x_ref[...]
    w1 = w1_ref[...]
    b1 = scal_ref[0]
    w2 = scal_ref[1]
    b2 = scal_ref[2]
    w3 = scal_ref[3]
    b3 = scal_ref[4]

    # fc1: one MXU matmul covers P samples per vreg row; f32 accumulation.
    h = jnp.dot(x, w1, preferred_element_type=jnp.float32,
                precision=jax.lax.Precision.HIGHEST) + b1
    h = jnp.maximum(h, 0.0)                     # ReLU
    h = jnp.maximum(h * w2 + b2, 0.0)           # fc2 (1->1) + ReLU, pure VPU
    h = h * w3 + b3                             # fc3 (1->1)
    # sigmoid(x) = 0.5*(tanh(x/2)+1): EUP tanh + 2 VPU ops, exact (no approx).
    o_ref[...] = 0.5 * (jnp.tanh(0.5 * h) + 1.0)


def _round_up(a, m):
    return -(-a // m) * m


def pack_params(fc1_w, fc1_b, fc2_w, fc2_b, fc3_w, fc3_b):
    """One-time parameter packing (hoisted out of the per-call hot path)."""
    fc1_w = jnp.asarray(fc1_w, jnp.float32)
    D = fc1_w.shape[-1]
    P = 128 // D if (D <= 128 and 128 % D == 0) else 1  # samples per vreg row
    K = P * D
    # Block-diagonal replication: w1p[p*D + d, p] = fc1_w[0, d].
    w1p = jnp.kron(jnp.eye(P, dtype=jnp.float32), fc1_w.reshape(D, 1))  # (K, P)
    scal = jnp.array(
        [fc1_b[0], fc2_w[0, 0], fc2_b[0], fc3_w[0, 0], fc3_b[0]],
        dtype=jnp.float32,
    )
    return w1p, scal, P, K


def mlp_forward_packed(x, w1p, scal, P, K, *, tm=1024, min_steps=4):
    """x: (B, D) float32, params pre-packed by pack_params."""
    B, D = x.shape
    assert P * D == K, (P, D, K)
    x = x.astype(jnp.float32)

    rows = -(-B // P)                       # packed rows needed
    rows8 = _round_up(rows, 8)
    max_steps = max(rows8 // 8, 1)          # keep tm_eff >= 8 sublane rows
    # Enough steps that (a) tiles respect the tm budget and (b) v7x's two
    # TensorCores both get work; even step counts split the grid 50/50.
    n_steps = max(-(-rows // tm), min(min_steps, max_steps))
    if n_steps > 1 and n_steps % 2 == 1:
        n_steps += 1
    tm_eff = _round_up(-(-rows // n_steps), 8)
    rows_padded = n_steps * tm_eff
    b_final = rows_padded * P

    # Single fused pad: packing tail + grid tail together (< 8*n_steps rows).
    if b_final != B:
        x = jnp.pad(x, ((0, b_final - B), (0, 0)))
    xp = x.reshape(rows_padded, K)          # contiguous reinterpret, no copy

    out = pl.pallas_call(
        mlp_kernel,
        out_shape=jax.ShapeDtypeStruct((rows_padded, P), jnp.float32),
        grid=(n_steps,),
        in_specs=[
            pl.BlockSpec((tm_eff, K), lambda i: (i, 0)),
            # constant block index -> pipeliner keeps it resident, no re-DMA
            pl.BlockSpec((K, P), lambda i: (0, 0)),
            pl.BlockSpec(memory_space=pltpu.MemorySpace.SMEM),
        ],
        out_specs=pl.BlockSpec((tm_eff, P), lambda i: (i, 0)),
        compiler_params=pltpu.CompilerParams(
            dimension_semantics=("parallel",),   # shards batch across 2 TCs on v7x
        ),
    )(xp, w1p, scal)

    # Unpack (rows_padded, P) -> (B, 1); padded samples are discarded.
    return out.reshape(rows_padded * P, 1)[:B]


def mlp_forward(x, fc1_w, fc1_b, fc2_w, fc2_b, fc3_w, fc3_b, *, tm=1024):
    w1p, scal, P, K = pack_params(fc1_w, fc1_b, fc2_w, fc2_b, fc3_w, fc3_b)
    return mlp_forward_packed(x, w1p, scal, P, K, tm=tm)


def mlp_reference(x, fc1_w, fc1_b, fc2_w, fc2_b, fc3_w, fc3_b):
    # Pure f32 VPU reference.
    h = jnp.maximum(jnp.sum(x * fc1_w[0], axis=-1, keepdims=True) + fc1_b, 0.0)
    h = jnp.maximum(h * fc2_w[0, 0] + fc2_b, 0.0)
    h = h * fc3_w[0, 0] + fc3_b
    return 1.0 / (1.0 + jnp.exp(-h))


if __name__ == "__main__":
    key = jax.random.PRNGKey(0)
    D = 32  # input_dim

    k_x, k1w, k1b, k2w, k2b, k3w, k3b, k_x2 = jax.random.split(key, 8)

    # Deterministic PyTorch-like init: uniform(-1/sqrt(fan_in), +1/sqrt(fan_in)).
    bound1 = 1.0 / jnp.sqrt(D)
    fc1_w = jax.random.uniform(k1w, (1, D), minval=-bound1, maxval=bound1)
    fc1_b = jax.random.uniform(k1b, (1,), minval=-bound1, maxval=bound1)
    fc2_w = jax.random.uniform(k2w, (1, 1), minval=-1.0, maxval=1.0)
    fc2_b = jax.random.uniform(k2b, (1,), minval=-1.0, maxval=1.0)
    fc3_w = jax.random.uniform(k3w, (1, 1), minval=-1.0, maxval=1.0)
    fc3_b = jax.random.uniform(k3b, (1,), minval=-1.0, maxval=1.0)

    # Parameter packing done once and reused for both batches (hot-path hoist).
    w1p, scal, P, K = pack_params(fc1_w, fc1_b, fc2_w, fc2_b, fc3_w, fc3_b)

    # Small batch (matches the toy module usage).
    B = 16
    x = jax.random.normal(k_x, (B, D), dtype=jnp.float32)
    out = jax.block_until_ready(mlp_forward_packed(x, w1p, scal, P, K))
    ref = mlp_reference(x, fc1_w, fc1_b, fc2_w, fc2_b, fc3_w, fc3_b)
    assert out.shape == (B, 1), out.shape
    assert jnp.allclose(out, ref, atol=1e-5, rtol=1e-4), (out, ref)

    # Ragged batch: exercises sample packing, the single fused pad and a
    # multi-step (>= 4) grid with an even split across TensorCores.
    B2 = 4099
    x2 = jax.random.normal(k_x2, (B2, D), dtype=jnp.float32)
    out2 = jax.block_until_ready(mlp_forward_packed(x2, w1p, scal, P, K))
    ref2 = mlp_reference(x2, fc1_w, fc1_b, fc2_w, fc2_b, fc3_w, fc3_b)
    assert out2.shape == (B2, 1), out2.shape
    assert jnp.allclose(out2, ref2, atol=1e-5, rtol=1e-4)

    print("KERNEL_OK")
</pallas_src>

<mosaic_0001>
module attributes {stable_mosaic.version = 11 : i64} {
  func.func @mlp_kernel(%arg0: i32, %arg1: memref<8x128xf32, #tpu.memory_space<vmem>>, %arg2: memref<128x4xf32, #tpu.memory_space<vmem>>, %arg3: memref<5xf32, #tpu.memory_space<smem>>, %arg4: memref<8x4xf32, #tpu.memory_space<vmem>>) attributes {dimension_semantics = [#tpu.dimension_semantics<parallel>], iteration_bounds = array<i64: 1>, scalar_prefetch = 0 : i64, scratch_operands = 0 : i64, tpu.core_type = #tpu.core_type<tc>, window_params = [{transform_indices = @transform_0, window_bounds = array<i64: 8, 128>}, {pipeline_mode = #tpu.pipeline_mode<synchronous>, transform_indices = @transform_1, window_bounds = array<i64: 128, 4>}, {transform_indices = @transform_2, window_bounds = array<i64: 5>}, {transform_indices = @transform_3, window_bounds = array<i64: 8, 4>}]} {
    %c0 = arith.constant 0 : index
    %c0_0 = arith.constant 0 : index
    %0 = vector.load %arg1[%c0, %c0_0] : memref<8x128xf32, #tpu.memory_space<vmem>>, vector<8x128xf32>
    %c0_1 = arith.constant 0 : index
    %c0_2 = arith.constant 0 : index
    %1 = vector.load %arg2[%c0_1, %c0_2] : memref<128x4xf32, #tpu.memory_space<vmem>>, vector<128x4xf32>
    %c0_3 = arith.constant 0 : index
    %2 = memref.load %arg3[%c0_3] : memref<5xf32, #tpu.memory_space<smem>>
    %c1 = arith.constant 1 : index
    %3 = memref.load %arg3[%c1] : memref<5xf32, #tpu.memory_space<smem>>
    %c2 = arith.constant 2 : index
    %4 = memref.load %arg3[%c2] : memref<5xf32, #tpu.memory_space<smem>>
    %c3 = arith.constant 3 : index
    %5 = memref.load %arg3[%c3] : memref<5xf32, #tpu.memory_space<smem>>
    %c4 = arith.constant 4 : index
    %6 = memref.load %arg3[%c4] : memref<5xf32, #tpu.memory_space<smem>>
    %cst = arith.constant dense<0.000000e+00> : vector<8x4xf32>
    %7 = tpu.matmul %0, %1, %cst {dimension_numbers = #tpu.dot_dimension_numbers<[1], [0], [0], [1], [0, 0, 1, 1], [], []>, precision = #tpu.contract_precision<fp32>} : vector<8x128xf32>, vector<128x4xf32>, vector<8x4xf32> -> vector<8x4xf32>
    %8 = vector.broadcast %2 : f32 to vector<8x4xf32>
    %9 = arith.addf %7, %8 : vector<8x4xf32>
    %cst_4 = arith.constant 0.000000e+00 : f32
    %10 = vector.broadcast %cst_4 : f32 to vector<8x4xf32>
    %11 = arith.maximumf %9, %10 : vector<8x4xf32>
    %12 = vector.broadcast %3 : f32 to vector<8x4xf32>
    %13 = arith.mulf %11, %12 : vector<8x4xf32>
    %14 = vector.broadcast %4 : f32 to vector<8x4xf32>
    %15 = arith.addf %13, %14 : vector<8x4xf32>
    %cst_5 = arith.constant 0.000000e+00 : f32
    %16 = vector.broadcast %cst_5 : f32 to vector<8x4xf32>
    %17 = arith.maximumf %15, %16 : vector<8x4xf32>
    %18 = vector.broadcast %5 : f32 to vector<8x4xf32>
    %19 = arith.mulf %17, %18 : vector<8x4xf32>
    %20 = vector.broadcast %6 : f32 to vector<8x4xf32>
    %21 = arith.addf %19, %20 : vector<8x4xf32>
    %cst_6 = arith.constant 5.000000e-01 : f32
    %22 = vector.broadcast %cst_6 : f32 to vector<8x4xf32>
    %23 = arith.mulf %22, %21 : vector<8x4xf32>
    %24 = math.tanh %23 : vector<8x4xf32>
    %cst_7 = arith.constant 1.000000e+00 : f32
    %25 = vector.broadcast %cst_7 : f32 to vector<8x4xf32>
    %26 = arith.addf %24, %25 : vector<8x4xf32>
    %cst_8 = arith.constant 5.000000e-01 : f32
    %27 = vector.broadcast %cst_8 : f32 to vector<8x4xf32>
    %28 = arith.mulf %27, %26 : vector<8x4xf32>
    %c0_9 = arith.constant 0 : index
    %c0_10 = arith.constant 0 : index
    %29 = vector.load %arg4[%c0_9, %c0_10] : memref<8x4xf32, #tpu.memory_space<vmem>>, vector<8x4xf32>
    tpu.vector_store %arg4[%c0_9, %c0_10], %28 {strides = array<i32>} : memref<8x4xf32, #tpu.memory_space<vmem>>, vector<8x4xf32>,
    return
  }
  func.func @transform_0(%arg0: i32) -> (i32, i32) {
    %c0_i32 = arith.constant 0 : i32
    %c0_i32_0 = arith.constant 0 : i32
    return %arg0, %c0_i32 : i32, i32
  }
  func.func @transform_1(%arg0: i32) -> (i32, i32) {
    %c0_i32 = arith.constant 0 : i32
    %c0_i32_0 = arith.constant 0 : i32
    %c0_i32_1 = arith.constant 0 : i32
    return %c0_i32, %c0_i32_0 : i32, i32
  }
  func.func @transform_2(%arg0: i32) -> i32 {
    %c0_i32 = arith.constant 0 : i32
    %c0_i32_0 = arith.constant 0 : i32
    return %c0_i32 : i32
  }
  func.func @transform_3(%arg0: i32) -> (i32, i32) {
    %c0_i32 = arith.constant 0 : i32
    %c0_i32_0 = arith.constant 0 : i32
    return %arg0, %c0_i32 : i32, i32
  }
}

</mosaic_0001>

<llo_original>
// kernel: tpu_custom_call.1
$region0: #{tpu_custom_call.1}
  #allocation0 [shape = 'u32[]', space=smem, size = 0x4, offset = 0x4, fixed_abs, tag = 'smem constant byte address 0x4 - core index']
  #allocation1 [shape = 'u32[72,128]{1,0:T(1,128)}', space=vmem, size = 0x9000, scoped, tag = 'internal scratch']
  %s0 = inlined_call_operand.vmem [shape: f32[8,128], index: 0, kind: input, shape index: {}]
  %s1 = inlined_call_operand.vmem [shape: f32[128,4], index: 1, kind: input, shape index: {}]
  %s2 = inlined_call_operand.vmem [shape: f32[5], index: 2, kind: input, shape index: {}]
  %s3 = inlined_call_operand.vmem [shape: f32[8,4], index: 3, kind: output, shape index: {}]
  %s4 = sld [smem:[#allocation0]]
  $region26: #{tpu_custom_call.1} parent=0
    _
  %s6 = ssub.s32 1, %s4
  %s7 = scalar_select 0, %s6, %s4
  $region1: #{tpu_custom_call.1} parent=0
    #allocation2 [shape = 'u8[512]{0}', space=smem, size = 0x200, scoped, tag = 'input window, operand 2, single buffered']
    #allocation3 [shape = 's32[1]{0}', space=sflag, size = 0x4, scoped, tag = 'scoped memory for tpu_custom_call.1']
    %8 = vsyncpa [#allocation3], 0
    // Predicated region
    $region2: #{tpu_custom_call.1} parent=1 // pred_check
      _
    $region3: #{tpu_custom_call.1} parent=1 // pred_check_branch
      %10 = sbr.rel (0) target = $region5
    $region4: #{tpu_custom_call.1} parent=1 // pred_region
      _
    $region5: #{tpu_custom_call.1} parent=1 // pred_fallthru
      _
    // Predicated region
    $region6: #{tpu_custom_call.1} parent=1 // pred_check
      _
    $region7: #{tpu_custom_call.1} parent=1 // pred_check_branch
      %12 = sbr.rel (0) target = $region9
    $region8: #{tpu_custom_call.1} parent=1 // pred_region
      _
    $region9: #{tpu_custom_call.1} parent=1 // pred_fallthru
      _
    // Predicated region
    $region10: #{tpu_custom_call.1} parent=1 // pred_check
      _
    $region11: #{tpu_custom_call.1} parent=1 // pred_check_branch
      %14 = sbr.rel (0) target = $region13
    $region12: #{tpu_custom_call.1} parent=1 // pred_region
      %16 = vsyncadd [#allocation3], 0
      %s18 = sshll.u32 %s2, 4
      %s19 = int_to_ptr.vmem [resolvable:$true] %s18
      %21 = dma.vmem_to_smem %s19, 16, [#allocation2], [#allocation3]
    $region13: #{tpu_custom_call.1} parent=1 // pred_fallthru
      _
    // Predicated region
    $region14: #{tpu_custom_call.1} parent=1 // pred_check
      _
    $region15: #{tpu_custom_call.1} parent=1 // pred_check_branch
      %23 = sbr.rel (0) target = $region17
    $region16: #{tpu_custom_call.1} parent=1 // pred_region
      %25 = dma.done [#allocation3], 16
    $region17: #{tpu_custom_call.1} parent=1 // pred_fallthru
      _
    %26 = sfence
    %v27 = vld [vmem:[%s0] sm:$0xff]
    %v28 = vld [vmem:[%s1] sm:$0xff]
    %v29 = vld [vmem:[%s1 + $0x8] sm:$0xff]
    %v30 = vld [vmem:[%s1 + $0x10] sm:$0xff]
    %v31 = vld [vmem:[%s1 + $0x18] sm:$0xff]
    %v32 = vld [vmem:[%s1 + $0x20] sm:$0xff]
    %v33 = vld [vmem:[%s1 + $0x28] sm:$0xff]
    %v34 = vld [vmem:[%s1 + $0x30] sm:$0xff]
    %v35 = vld [vmem:[%s1 + $0x38] sm:$0xff]
    %v36 = vld [vmem:[%s1 + $0x40] sm:$0xff]
    %v37 = vld [vmem:[%s1 + $0x48] sm:$0xff]
    %v38 = vld [vmem:[%s1 + $0x50] sm:$0xff]
    %v39 = vld [vmem:[%s1 + $0x58] sm:$0xff]
    %v40 = vld [vmem:[%s1 + $0x60] sm:$0xff]
    %v41 = vld [vmem:[%s1 + $0x68] sm:$0xff]
    %v42 = vld [vmem:[%s1 + $0x70] sm:$0xff]
    %v43 = vld [vmem:[%s1 + $0x78] sm:$0xff]
    %s44 = sld [smem:[#allocation2]]
    %s45 = sld [smem:[#allocation2 + $0x1]]
    %s46 = sld [smem:[#allocation2 + $0x2]]
    %s47 = sld [smem:[#allocation2 + $0x3]]
    %s48 = sld [smem:[#allocation2 + $0x4]]
    %v49 = vstv %s44
    %v50 = vand.u32 %v43, 4294901760
    %51 = vmatpush.msra.mxu0 %v50
    %v52 = vand.u32 %v42, 4294901760
    %53 = vmatpush.msra.mxu0 %v52
    %v54 = vand.u32 %v41, 4294901760
    %55 = vmatpush.msra.mxu0 %v54
    %v56 = vand.u32 %v40, 4294901760
    %57 = vmatpush.msra.mxu0 %v56
    %v58 = vand.u32 %v39, 4294901760
    %59 = vmatpush.msra.mxu0 %v58
    %v60 = vand.u32 %v38, 4294901760
    %61 = vmatpush.msra.mxu0 %v60
    %v62 = vand.u32 %v37, 4294901760
    %63 = vmatpush.msra.mxu0 %v62
    %v64 = vand.u32 %v36, 4294901760
    %65 = vmatpush.msra.mxu0 %v64
    %v66 = vand.u32 %v35, 4294901760
    %67 = vmatpush.msra.mxu0 %v66
    %v68 = vand.u32 %v34, 4294901760
    %69 = vmatpush.msra.mxu0 %v68
    %v70 = vand.u32 %v33, 4294901760
    %71 = vmatpush.msra.mxu0 %v70
    %v72 = vand.u32 %v32, 4294901760
    %73 = vmatpush.msra.mxu0 %v72
    %v74 = vand.u32 %v31, 4294901760
    %75 = vmatpush.msra.mxu0 %v74
    %v76 = vand.u32 %v30, 4294901760
    %77 = vmatpush.msra.mxu0 %v76
    %v78 = vand.u32 %v29, 4294901760
    %79 = vmatpush.msra.mxu0 %v78
    %v80 = vand.u32 %v28, 4294901760
    %81 = vmatpush.msra.mxu0 %v80
    %v82 = vand.u32 %v27, 4294901760
    %v83 = vsub.f32 %v27, %v82
    %v84 = vand.u32 %v83, 4294901760
    %v85 = vsub.f32 %v83, %v84
    %v86 = vand.u32 %v85, 4294901760
    %87 = vmatmul.f32.gmra.mxu0 %v86
    %v88 = vpop.f32.mrf.mxu0
    %v89 = vadd.f32 %v49, %v88
    %90 = vdwg.mxu0
    %v91 = vand.u32 %v43, 4294901760
    %v92 = vsub.f32 %v43, %v91
    %v93 = vand.u32 %v92, 4294901760
    %v94 = vsub.f32 %v92, %v93
    %v95 = vand.u32 %v94, 4294901760
    %96 = vmatpush.msra.mxu0 %v95
    %v97 = vand.u32 %v42, 4294901760
    %v98 = vsub.f32 %v42, %v97
    %v99 = vand.u32 %v98, 4294901760
    %v100 = vsub.f32 %v98, %v99
    %v101 = vand.u32 %v100, 4294901760
    %102 = vmatpush.msra.mxu0 %v101
    %v103 = vand.u32 %v41, 4294901760
    %v104 = vsub.f32 %v41, %v103
    %v105 = vand.u32 %v104, 4294901760
    %v106 = vsub.f32 %v104, %v105
    %v107 = vand.u32 %v106, 4294901760
    %108 = vmatpush.msra.mxu0 %v107
    %v109 = vand.u32 %v40, 4294901760
    %v110 = vsub.f32 %v40, %v109
    %v111 = vand.u32 %v110, 4294901760
    %v112 = vsub.f32 %v110, %v111
    %v113 = vand.u32 %v112, 4294901760
    %114 = vmatpush.msra.mxu0 %v113
    %v115 = vand.u32 %v39, 4294901760
    %v116 = vsub.f32 %v39, %v115
    %v117 = vand.u32 %v116, 4294901760
    %v118 = vsub.f32 %v116, %v117
    %v119 = vand.u32 %v118, 4294901760
    %120 = vmatpush.msra.mxu0 %v119
    %v121 = vand.u32 %v38, 4294901760
    %v122 = vsub.f32 %v38, %v121
    %v123 = vand.u32 %v122, 4294901760
    %v124 = vsub.f32 %v122, %v123
    %v125 = vand.u32 %v124, 4294901760
    %126 = vmatpush.msra.mxu0 %v125
    %v127 = vand.u32 %v37, 4294901760
    %v128 = vsub.f32 %v37, %v127
    %v129 = vand.u32 %v128, 4294901760
    %v130 = vsub.f32 %v128, %v129
    %v131 = vand.u32 %v130, 4294901760
    %132 = vmatpush.msra.mxu0 %v131
    %v133 = vand.u32 %v36, 4294901760
    %v134 = vsub.f32 %v36, %v133
    %v135 = vand.u32 %v134, 4294901760
    %v136 = vsub.f32 %v134, %v135
    %v137 = vand.u32 %v136, 4294901760
    %138 = vmatpush.msra.mxu0 %v137
    %v139 = vand.u32 %v35, 4294901760
    %v140 = vsub.f32 %v35, %v139
    %v141 = vand.u32 %v140, 4294901760
    %v142 = vsub.f32 %v140, %v141
    %v143 = vand.u32 %v142, 4294901760
    %144 = vmatpush.msra.mxu0 %v143
    %v145 = vand.u32 %v34, 4294901760
    %v146 = vsub.f32 %v34, %v145
    %v147 = vand.u32 %v146, 4294901760
    %v148 = vsub.f32 %v146, %v147
    %v149 = vand.u32 %v148, 4294901760
    %150 = vmatpush.msra.mxu0 %v149
    %v151 = vand.u32 %v33, 4294901760
    %v152 = vsub.f32 %v33, %v151
    %v153 = vand.u32 %v152, 4294901760
    %v154 = vsub.f32 %v152, %v153
    %v155 = vand.u32 %v154, 4294901760
    %156 = vmatpush.msra.mxu0 %v155
    %v157 = vand.u32 %v32, 4294901760
    %v158 = vsub.f32 %v32, %v157
    %v159 = vand.u32 %v158, 4294901760
    %v160 = vsub.f32 %v158, %v159
    %v161 = vand.u32 %v160, 4294901760
    %162 = vmatpush.msra.mxu0 %v161
    %v163 = vand.u32 %v31, 4294901760
    %v164 = vsub.f32 %v31, %v163
    %v165 = vand.u32 %v164, 4294901760
    %v166 = vsub.f32 %v164, %v165
    %v167 = vand.u32 %v166, 4294901760
    %168 = vmatpush.msra.mxu0 %v167
    %v169 = vand.u32 %v30, 4294901760
    %v170 = vsub.f32 %v30, %v169
    %v171 = vand.u32 %v170, 4294901760
    %v172 = vsub.f32 %v170, %v171
    %v173 = vand.u32 %v172, 4294901760
    %174 = vmatpush.msra.mxu0 %v173
    %v175 = vand.u32 %v29, 4294901760
    %v176 = vsub.f32 %v29, %v175
    %v177 = vand.u32 %v176, 4294901760
    %v178 = vsub.f32 %v176, %v177
    %v179 = vand.u32 %v178, 4294901760
    %180 = vmatpush.msra.mxu0 %v179
    %v181 = vand.u32 %v28, 4294901760
    %v182 = vsub.f32 %v28, %v181
    %v183 = vand.u32 %v182, 4294901760
    %v184 = vsub.f32 %v182, %v183
    %v185 = vand.u32 %v184, 4294901760
    %186 = vmatpush.msra.mxu0 %v185
    %v187 = vand.u32 %v27, 4294901760
    %188 = vmatmul.f32.gmra.mxu0 %v187
    %v189 = vpop.f32.mrf.mxu0
    %v190 = vadd.f32 %v89, %v189
    %191 = vdwg.mxu0
    %v192 = vand.u32 %v43, 4294901760
    %v193 = vsub.f32 %v43, %v192
    %194 = vmatpush.msra.mxu0 %v193
    %v195 = vand.u32 %v42, 4294901760
    %v196 = vsub.f32 %v42, %v195
    %197 = vmatpush.msra.mxu0 %v196
    %v198 = vand.u32 %v41, 4294901760
    %v199 = vsub.f32 %v41, %v198
    %200 = vmatpush.msra.mxu0 %v199
    %v201 = vand.u32 %v40, 4294901760
    %v202 = vsub.f32 %v40, %v201
    %203 = vmatpush.msra.mxu0 %v202
    %v204 = vand.u32 %v39, 4294901760
    %v205 = vsub.f32 %v39, %v204
    %206 = vmatpush.msra.mxu0 %v205
    %v207 = vand.u32 %v38, 4294901760
    %v208 = vsub.f32 %v38, %v207
    %209 = vmatpush.msra.mxu0 %v208
    %v210 = vand.u32 %v37, 4294901760
    %v211 = vsub.f32 %v37, %v210
    %212 = vmatpush.msra.mxu0 %v211
    %v213 = vand.u32 %v36, 4294901760
    %v214 = vsub.f32 %v36, %v213
    %215 = vmatpush.msra.mxu0 %v214
    %v216 = vand.u32 %v35, 4294901760
    %v217 = vsub.f32 %v35, %v216
    %218 = vmatpush.msra.mxu0 %v217
    %v219 = vand.u32 %v34, 4294901760
    %v220 = vsub.f32 %v34, %v219
    %221 = vmatpush.msra.mxu0 %v220
    %v222 = vand.u32 %v33, 4294901760
    %v223 = vsub.f32 %v33, %v222
    %224 = vmatpush.msra.mxu0 %v223
    %v225 = vand.u32 %v32, 4294901760
    %v226 = vsub.f32 %v32, %v225
    %227 = vmatpush.msra.mxu0 %v226
    %v228 = vand.u32 %v31, 4294901760
    %v229 = vsub.f32 %v31, %v228
    %230 = vmatpush.msra.mxu0 %v229
    %v231 = vand.u32 %v30, 4294901760
    %v232 = vsub.f32 %v30, %v231
    %233 = vmatpush.msra.mxu0 %v232
    %v234 = vand.u32 %v29, 4294901760
    %v235 = vsub.f32 %v29, %v234
    %236 = vmatpush.msra.mxu0 %v235
    %v237 = vand.u32 %v28, 4294901760
    %v238 = vsub.f32 %v28, %v237
    %239 = vmatpush.msra.mxu0 %v238
    %v240 = vand.u32 %v27, 4294901760
    %v241 = vsub.f32 %v27, %v240
    %242 = vmatmul.f32.gmra.mxu0 %v241
    %v243 = vpop.f32.mrf.mxu0
    %v244 = vadd.f32 %v190, %v243
    %245 = vdwg.mxu0
    %v246 = vand.u32 %v43, 4294901760
    %247 = vmatpush.msra.mxu0 %v246
    %v248 = vand.u32 %v42, 4294901760
    %249 = vmatpush.msra.mxu0 %v248
    %v250 = vand.u32 %v41, 4294901760
    %251 = vmatpush.msra.mxu0 %v250
    %v252 = vand.u32 %v40, 4294901760
    %253 = vmatpush.msra.mxu0 %v252
    %v254 = vand.u32 %v39, 4294901760
    %255 = vmatpush.msra.mxu0 %v254
    %v256 = vand.u32 %v38, 4294901760
    %257 = vmatpush.msra.mxu0 %v256
    %v258 = vand.u32 %v37, 4294901760
    %259 = vmatpush.msra.mxu0 %v258
    %v260 = vand.u32 %v36, 4294901760
    %261 = vmatpush.msra.mxu0 %v260
    %v262 = vand.u32 %v35, 4294901760
    %263 = vmatpush.msra.mxu0 %v262
    %v264 = vand.u32 %v34, 4294901760
    %265 = vmatpush.msra.mxu0 %v264
    %v266 = vand.u32 %v33, 4294901760
    %267 = vmatpush.msra.mxu0 %v266
    %v268 = vand.u32 %v32, 4294901760
    %269 = vmatpush.msra.mxu0 %v268
    %v270 = vand.u32 %v31, 4294901760
    %271 = vmatpush.msra.mxu0 %v270
    %v272 = vand.u32 %v30, 4294901760
    %273 = vmatpush.msra.mxu0 %v272
    %v274 = vand.u32 %v29, 4294901760
    %275 = vmatpush.msra.mxu0 %v274
    %v276 = vand.u32 %v28, 4294901760
    %277 = vmatpush.msra.mxu0 %v276
    %v278 = vand.u32 %v27, 4294901760
    %v279 = vsub.f32 %v27, %v278
    %v280 = vand.u32 %v279, 4294901760
    %281 = vmatmul.f32.gmra.mxu0 %v280
    %v282 = vpop.f32.mrf.mxu0
    %v283 = vadd.f32 %v244, %v282
    %284 = vdwg.mxu0
    %v285 = vand.u32 %v43, 4294901760
    %v286 = vsub.f32 %v43, %v285
    %v287 = vand.u32 %v286, 4294901760
    %288 = vmatpush.msra.mxu0 %v287
    %v289 = vand.u32 %v42, 4294901760
    %v290 = vsub.f32 %v42, %v289
    %v291 = vand.u32 %v290, 4294901760
    %292 = vmatpush.msra.mxu0 %v291
    %v293 = vand.u32 %v41, 4294901760
    %v294 = vsub.f32 %v41, %v293
    %v295 = vand.u32 %v294, 4294901760
    %296 = vmatpush.msra.mxu0 %v295
    %v297 = vand.u32 %v40, 4294901760
    %v298 = vsub.f32 %v40, %v297
    %v299 = vand.u32 %v298, 4294901760
    %300 = vmatpush.msra.mxu0 %v299
    %v301 = vand.u32 %v39, 4294901760
    %v302 = vsub.f32 %v39, %v301
    %v303 = vand.u32 %v302, 4294901760
    %304 = vmatpush.msra.mxu0 %v303
    %v305 = vand.u32 %v38, 4294901760
    %v306 = vsub.f32 %v38, %v305
    %v307 = vand.u32 %v306, 4294901760
    %308 = vmatpush.msra.mxu0 %v307
    %v309 = vand.u32 %v37, 4294901760
    %v310 = vsub.f32 %v37, %v309
    %v311 = vand.u32 %v310, 4294901760
    %312 = vmatpush.msra.mxu0 %v311
    %v313 = vand.u32 %v36, 4294901760
    %v314 = vsub.f32 %v36, %v313
    %v315 = vand.u32 %v314, 4294901760
    %316 = vmatpush.msra.mxu0 %v315
    %v317 = vand.u32 %v35, 4294901760
    %v318 = vsub.f32 %v35, %v317
    %v319 = vand.u32 %v318, 4294901760
    %320 = vmatpush.msra.mxu0 %v319
    %v321 = vand.u32 %v34, 4294901760
    %v322 = vsub.f32 %v34, %v321
    %v323 = vand.u32 %v322, 4294901760
    %324 = vmatpush.msra.mxu0 %v323
    %v325 = vand.u32 %v33, 4294901760
    %v326 = vsub.f32 %v33, %v325
    %v327 = vand.u32 %v326, 4294901760
    %328 = vmatpush.msra.mxu0 %v327
    %v329 = vand.u32 %v32, 4294901760
    %v330 = vsub.f32 %v32, %v329
    %v331 = vand.u32 %v330, 4294901760
    %332 = vmatpush.msra.mxu0 %v331
    %v333 = vand.u32 %v31, 4294901760
    %v334 = vsub.f32 %v31, %v333
    %v335 = vand.u32 %v334, 4294901760
    %336 = vmatpush.msra.mxu0 %v335
    %v337 = vand.u32 %v30, 4294901760
    %v338 = vsub.f32 %v30, %v337
    %v339 = vand.u32 %v338, 4294901760
    %340 = vmatpush.msra.mxu0 %v339
    %v341 = vand.u32 %v29, 4294901760
    %v342 = vsub.f32 %v29, %v341
    %v343 = vand.u32 %v342, 4294901760
    %344 = vmatpush.msra.mxu0 %v343
    %v345 = vand.u32 %v28, 4294901760
    %v346 = vsub.f32 %v28, %v345
    %v347 = vand.u32 %v346, 4294901760
    %348 = vmatpush.msra.mxu0 %v347
    %v349 = vand.u32 %v27, 4294901760
    %350 = vmatmul.f32.gmra.mxu0 %v349
    %v351 = vpop.f32.mrf.mxu0
    %v352 = vadd.f32 %v283, %v351
    %353 = vdwg.mxu0
    %v354 = vand.u32 %v43, 4294901760
    %355 = vmatpush.msra.mxu0 %v354
    %v356 = vand.u32 %v42, 4294901760
    %357 = vmatpush.msra.mxu0 %v356
    %v358 = vand.u32 %v41, 4294901760
    %359 = vmatpush.msra.mxu0 %v358
    %v360 = vand.u32 %v40, 4294901760
    %361 = vmatpush.msra.mxu0 %v360
    %v362 = vand.u32 %v39, 4294901760
    %363 = vmatpush.msra.mxu0 %v362
    %v364 = vand.u32 %v38, 4294901760
    %365 = vmatpush.msra.mxu0 %v364
    %v366 = vand.u32 %v37, 4294901760
    %367 = vmatpush.msra.mxu0 %v366
    %v368 = vand.u32 %v36, 4294901760
    %369 = vmatpush.msra.mxu0 %v368
    %v370 = vand.u32 %v35, 4294901760
    %371 = vmatpush.msra.mxu0 %v370
    %v372 = vand.u32 %v34, 4294901760
    %373 = vmatpush.msra.mxu0 %v372
    %v374 = vand.u32 %v33, 4294901760
    %375 = vmatpush.msra.mxu0 %v374
    %v376 = vand.u32 %v32, 4294901760
    %377 = vmatpush.msra.mxu0 %v376
    %v378 = vand.u32 %v31, 4294901760
    %379 = vmatpush.msra.mxu0 %v378
    %v380 = vand.u32 %v30, 4294901760
    %381 = vmatpush.msra.mxu0 %v380
    %v382 = vand.u32 %v29, 4294901760
    %383 = vmatpush.msra.mxu0 %v382
    %v384 = vand.u32 %v28, 4294901760
    %385 = vmatpush.msra.mxu0 %v384
    %v386 = vand.u32 %v27, 4294901760
    %387 = vmatmul.f32.gmra.mxu0 %v386
    %v388 = vpop.f32.mrf.mxu0
    %v389 = vadd.f32 %v352, %v388
    %390 = vdwg.mxu0
    %v391 = vmax.f32 %v389, 0.0
    %v392 = vstv %s45
    %v393 = vmul.f32 %v391, %v392
    %v394 = vstv %s46
    %v395 = vadd.f32 %v393, %v394
    %v396 = vmax.f32 %v395, 0.0
    %v397 = vstv %s47
    %v398 = vmul.f32 %v396, %v397
    %v399 = vstv %s48
    %v400 = vadd.f32 %v398, %v399
    %v401 = vmul.f32 %v400, 0.5
    %v402 = vtanh.pop %v401
    %v403 = vadd.f32 %v402, 1.0
    %v404 = vmul.f32 %v403, 0.5
    %vm405 = vcmask 31744
    %406 = vst.msk [vmem:[%s3] sm:$0xff] %vm405, %v404
    // Predicated region
    $region18: #{tpu_custom_call.1} parent=1 // pred_check
      _
    $region19: #{tpu_custom_call.1} parent=1 // pred_check_branch
      %408 = sbr.rel (0) target = $region21
    $region20: #{tpu_custom_call.1} parent=1 // pred_region
      _
    $region21: #{tpu_custom_call.1} parent=1 // pred_fallthru
      _
    // Predicated region
    $region22: #{tpu_custom_call.1} parent=1 // pred_check
      _
    $region23: #{tpu_custom_call.1} parent=1 // pred_check_branch
      %410 = sbr.rel (0) target = $region25
    $region24: #{tpu_custom_call.1} parent=1 // pred_region
      _
    $region25: #{tpu_custom_call.1} parent=1 // pred_fallthru
      _
    %411 = vsyncpa [#allocation3], 1

</llo_original>
